<compile_context>
chip_gen: v5e
topology: v5e:2x2
jax: 0.10.0
libtpu: 0.0.40
codegen_flags: <defaults>
</compile_context>

<pallas_src>
import jax
import jax.numpy as jnp
from jax.experimental import pallas as pl
from jax.experimental.pallas import tpu as pltpu

H = W = 14
HW = H * W  # 196


def ru_kernel(kb_ref, mem_ref, ctrl_ref, wm_t_ref, bm_ref, wc_ref, wa_ref,
              out_ref, stage_ref):
    # kb arrives in native NCHW layout: (TB, C, 196).  Swap the minor dims to
    # channels-last once per tile (XLU transpose, hidden under the kb DMA) so
    # every later broadcast/reduction only needs layout-friendly patterns
    # (size-1 sublane / size-1 lane broadcasts, lane & sublane reductions).
    kb_t = jnp.transpose(kb_ref[...].astype(jnp.float32), (0, 2, 1))  # (TB,196,C)

    mem = mem_ref[...].astype(jnp.float32)     # (TB, C)
    ctrl = ctrl_ref[...].astype(jnp.float32)   # (TB, C)

    # mem_trf = Linear(mem)                                   (TB, C) - MXU, M=TB
    mem_trf = jnp.dot(mem, wm_t_ref[...],
                      preferred_element_type=jnp.float32) + bm_ref[...]

    # Fold control and the attention row into a single per-batch C-vector v so
    # that logits = kb_cl @ v (+ const; const cancels in the softmax).
    # wc_ref holds the two halves of the ctrl_lin weight stacked as (2, C, C),
    # so a single operand / single double-buffer serves both matmuls.
    wa_eff = ctrl * wa_ref[...]                                         # (TB, C)
    p1 = jnp.dot(wa_eff, wc_ref[0], preferred_element_type=jnp.float32)
    p2 = jnp.dot(wa_eff, wc_ref[1], preferred_element_type=jnp.float32)
    v = mem_trf * p1 + p2                                               # (TB, C)

    # Lift v to (TB, 1, C) through a tiny VMEM scratch (the sliced store is a
    # contiguous per-row view -> no in-register relayout).
    stage_ref[:, 0, :] = v
    v3 = stage_ref[...]                                                 # (TB, 1, C)

    # Attention logits over the 196 spatial positions: VPU multiply (v3
    # broadcast along the 196-sublane axis) + lane (C) reduction.  No MXU.
    logits = jnp.sum(kb_t * v3, axis=-1, keepdims=True)                 # (TB, 196, 1)

    # Softmax over the spatial positions (sublane-axis reductions);
    # normalization is deferred to the final (TB, C) result.
    m = jnp.max(logits, axis=1, keepdims=True)                          # (TB, 1, 1)
    e = jnp.exp(logits - m)                                             # (TB, 196, 1)
    s = jnp.sum(e, axis=1, keepdims=True)                               # (TB, 1, 1)

    # Softmax-weighted read-out numerator: VPU multiply (e broadcast along the
    # C-lane axis) + sublane (196) reduction, f32 accumulation.
    num = jnp.sum(kb_t * e, axis=1, keepdims=True)                      # (TB, 1, C)

    # Deferred normalization; the EUP approximate reciprocal is a free slot.
    res = num * pl.reciprocal(s, approx=True)                           # (TB, 1, C)

    # Stage through the same VMEM scratch so the HBM writeback is a dense
    # 2-D (TB, C) block (lane-dense, sublane-dense store).
    stage_ref[...] = res
    out_ref[...] = stage_ref[:, 0, :].astype(out_ref.dtype)


def _round_up(x, m):
    return (x + m - 1) // m * m


def _vmem_capacity_bytes(default=64 * 1024 * 1024):
    try:
        info = pltpu.get_tpu_info()
        return int(getattr(info, "vmem_capacity_bytes", default))
    except Exception:
        return default


def _pick_batch_tile(B, C, vmem_limit_bytes, max_batch_tile=None):
    """Pick the batch tile TB from the VMEM budget (kb traffic dominates)."""
    bytes_per_row = 4 * (
        5 * C * HW           # kb block (2x double-buffered) + in-kernel
                             # channels-last copy + live VPU product temporaries
        + 2 * 25 * 8 * 128   # (TB, 196, 1) softmax intermediates (lane-padded)
        + 16 * C)            # mem/ctrl/out blocks + v staging scratch
    weight_bytes = 2 * 4 * (3 * C * C + 2 * C)   # double-buffered weight operands
    budget = int(0.75 * vmem_limit_bytes) - weight_bytes
    tb = max(8, min(256, (max(budget, 0) // bytes_per_row // 8) * 8))
    if max_batch_tile is not None:
        tb = max(1, min(tb, int(max_batch_tile)))
    if tb >= B and B >= 16:
        # Keep >= 2 grid steps so the "parallel" batch axis feeds both v7x cores.
        tb = min(tb, _round_up((B + 1) // 2, 8))
    if tb >= B:
        return B                                  # single full-batch block
    return max(8, (tb // 8) * 8)                  # tiled: sublane-aligned leading dim


def ru_cell_forward(mem, kb, control, params, *, max_batch_tile=None):
    """mem: (B, C); kb: (B, C, 14, 14) NCHW; control: (B, C)."""
    B, C = mem.shape
    assert kb.shape == (B, C, H, W)
    assert control.shape == (B, C)

    # Free, contiguous reshape only -- kb stays in its native NCHW layout and
    # is never rewritten in HBM (no transpose, no batch pad).
    kb_flat = kb.reshape(B, C, HW)

    wm, bm = params["mem_trf"]       # (C, C), (C,)
    wc, _bc = params["ctrl_lin"]     # (C, 2C), (C,)   (bc cancels in softmax)
    wa, _ba = params["attn"]         # (1, C), (1,)    (ba cancels in softmax)

    wm_t = wm.T                                         # (C, C): x @ Wm^T
    wc_stk = jnp.stack([wc[:, :C], wc[:, C:]], axis=0)  # (2, C, C) single operand
    bm_r = bm.reshape(1, C)
    wa_r = wa.reshape(1, C)

    vmem_limit = int(0.85 * _vmem_capacity_bytes())     # raise scoped VMEM limit
    TB = _pick_batch_tile(B, C, vmem_limit, max_batch_tile)
    G = pl.cdiv(B, TB)   # ragged tail handled by Pallas block masking (no HBM pad)

    # NOTE: the grid-invariant weight operands could be single-buffered via
    # pipeline_mode=pl.Buffered(1); they are small relative to the kb tile, so
    # the default pipelining is kept here.

    out = pl.pallas_call(
        ru_kernel,
        out_shape=jax.ShapeDtypeStruct((B, C), jnp.float32),
        grid_spec=pltpu.PrefetchScalarGridSpec(
            num_scalar_prefetch=0,
            grid=(G,),
            in_specs=[
                pl.BlockSpec((TB, C, HW), lambda g: (g, 0, 0)),   # kb (native NCHW)
                pl.BlockSpec((TB, C), lambda g: (g, 0)),          # mem
                pl.BlockSpec((TB, C), lambda g: (g, 0)),          # control
                pl.BlockSpec((C, C), lambda g: (0, 0)),           # Wm^T
                pl.BlockSpec((1, C), lambda g: (0, 0)),           # bm
                pl.BlockSpec((2, C, C), lambda g: (0, 0, 0)),     # Wc halves, stacked
                pl.BlockSpec((1, C), lambda g: (0, 0)),           # Wa row
            ],
            out_specs=pl.BlockSpec((TB, C), lambda g: (g, 0)),    # dense 2-D output
            scratch_shapes=[pltpu.VMEM((TB, 1, C), jnp.float32)],
        ),
        compiler_params=pltpu.CompilerParams(
            dimension_semantics=("parallel",),
            vmem_limit_bytes=vmem_limit),
    )(kb_flat, mem, control, wm_t, bm_r, wc_stk, wa_r)

    return out


def ru_cell_reference(mem, kb, control, params):
    """Pure-JAX reference mirroring the PyTorch forward."""
    B, C = mem.shape
    kb_p = jnp.transpose(kb, (0, 2, 3, 1))                         # (B,14,14,C)
    wm, bm = params["mem_trf"]
    wc, bc = params["ctrl_lin"]
    wa, ba = params["attn"]
    mem_trfed = mem @ wm.T + bm                                    # (B,C)
    inter = jnp.einsum('bc,bwhc->bwhc', mem_trfed, kb_p)
    cat = jnp.concatenate([inter, kb_p], axis=-1)                  # (B,14,14,2C)
    cat_trf = cat @ wc.T + bc                                      # (B,14,14,C)
    ctrled = jnp.einsum('bwhc,bc->bwhc', cat_trf, control)
    attended_flat = (ctrled @ wa.T + ba).reshape(B, -1)            # (B,196)
    attended = jax.nn.softmax(attended_flat, axis=-1).reshape(B, H, W)
    retrieved = jnp.einsum('bwhc,bwh->bc', kb_p, attended)
    return retrieved


def make_params(key, ctrl_dim):
    """Deterministic synthetic parameters matching torch.nn.Linear shapes."""
    k1, k2, k3, k4, k5, k6 = jax.random.split(key, 6)
    scale = 0.1
    return {
        "mem_trf": (scale * jax.random.normal(k1, (ctrl_dim, ctrl_dim), jnp.float32),
                    scale * jax.random.normal(k2, (ctrl_dim,), jnp.float32)),
        "ctrl_lin": (scale * jax.random.normal(k3, (ctrl_dim, 2 * ctrl_dim), jnp.float32),
                     scale * jax.random.normal(k4, (ctrl_dim,), jnp.float32)),
        "attn": (scale * jax.random.normal(k5, (1, ctrl_dim), jnp.float32),
                 scale * jax.random.normal(k6, (1,), jnp.float32)),
    }


if __name__ == "__main__":
    key = jax.random.PRNGKey(0)
    # (B=2,  C=32, None): single full-batch block (TB == B).
    # (B=10, C=32, None): single full-batch block, non-multiple-of-8 leading dim.
    # (B=10, C=32, 8):    TB=8, 2-step parallel grid with a masked ragged tail.
    for (B, C, tile) in [(2, 32, None), (10, 32, None), (10, 32, 8)]:
        kp, km, kk, kc, key = jax.random.split(key, 5)
        params = make_params(kp, C)
        mem = jax.random.normal(km, (B, C), jnp.float32)
        kb = jax.random.normal(kk, (B, C, H, W), jnp.float32)
        control = jax.random.normal(kc, (B, C), jnp.float32)

        out = jax.block_until_ready(
            ru_cell_forward(mem, kb, control, params, max_batch_tile=tile))
        ref = ru_cell_reference(mem, kb, control, params)
        assert out.shape == (B, C)
        # Tolerance 1e-3: the only deviation sources vs the f32 reference are
        # the EUP approximate reciprocal and the folded accumulation order.
        assert jnp.allclose(out, ref, atol=1e-3, rtol=1e-3), \
            f"mismatch (B={B}, C={C}, tile={tile})"

    print("KERNEL_OK")
</pallas_src>

<mosaic_0001>
module attributes {stable_mosaic.version = 11 : i64} {
  func.func @ru_kernel(%arg0: i32, %arg1: memref<2x32x196xf32, #tpu.memory_space<vmem>>, %arg2: memref<2x32xf32, #tpu.memory_space<vmem>>, %arg3: memref<2x32xf32, #tpu.memory_space<vmem>>, %arg4: memref<32x32xf32, #tpu.memory_space<vmem>>, %arg5: memref<1x32xf32, #tpu.memory_space<vmem>>, %arg6: memref<2x32x32xf32, #tpu.memory_space<vmem>>, %arg7: memref<1x32xf32, #tpu.memory_space<vmem>>, %arg8: memref<2x32xf32, #tpu.memory_space<vmem>>, %arg9: memref<2x1x32xf32, #tpu.memory_space<vmem>>) attributes {dimension_semantics = [#tpu.dimension_semantics<parallel>], iteration_bounds = array<i64: 1>, scalar_prefetch = 0 : i64, scratch_operands = 1 : i64, tpu.core_type = #tpu.core_type<tc>, window_params = [{transform_indices = @transform_0, window_bounds = array<i64: 2, 32, 196>}, {transform_indices = @transform_1, window_bounds = array<i64: 2, 32>}, {transform_indices = @transform_2, window_bounds = array<i64: 2, 32>}, {pipeline_mode = #tpu.pipeline_mode<synchronous>, transform_indices = @transform_3, window_bounds = array<i64: 32, 32>}, {pipeline_mode = #tpu.pipeline_mode<synchronous>, transform_indices = @transform_4, window_bounds = array<i64: 1, 32>}, {pipeline_mode = #tpu.pipeline_mode<synchronous>, transform_indices = @transform_5, window_bounds = array<i64: 2, 32, 32>}, {pipeline_mode = #tpu.pipeline_mode<synchronous>, transform_indices = @transform_6, window_bounds = array<i64: 1, 32>}, {transform_indices = @transform_7, window_bounds = array<i64: 2, 32>}]} {
    %c0 = arith.constant 0 : index
    %c0_0 = arith.constant 0 : index
    %c0_1 = arith.constant 0 : index
    %0 = vector.load %arg1[%c0, %c0_0, %c0_1] : memref<2x32x196xf32, #tpu.memory_space<vmem>>, vector<2x32x196xf32>
    %1 = tpu.transpose %0, [0, 2, 1] : vector<2x32x196xf32> -> vector<2x196x32xf32>
    %c0_2 = arith.constant 0 : index
    %c0_3 = arith.constant 0 : index
    %2 = vector.load %arg2[%c0_2, %c0_3] : memref<2x32xf32, #tpu.memory_space<vmem>>, vector<2x32xf32>
    %c0_4 = arith.constant 0 : index
    %c0_5 = arith.constant 0 : index
    %3 = vector.load %arg3[%c0_4, %c0_5] : memref<2x32xf32, #tpu.memory_space<vmem>>, vector<2x32xf32>
    %c0_6 = arith.constant 0 : index
    %c0_7 = arith.constant 0 : index
    %4 = vector.load %arg4[%c0_6, %c0_7] : memref<32x32xf32, #tpu.memory_space<vmem>>, vector<32x32xf32>
    %cst = arith.constant dense<0.000000e+00> : vector<2x32xf32>
    %5 = tpu.matmul %2, %4, %cst {dimension_numbers = #tpu.dot_dimension_numbers<[1], [0], [0], [1], [0, 0, 1, 1], [], []>} : vector<2x32xf32>, vector<32x32xf32>, vector<2x32xf32> -> vector<2x32xf32>
    %c0_8 = arith.constant 0 : index
    %c0_9 = arith.constant 0 : index
    %6 = vector.load %arg5[%c0_8, %c0_9] : memref<1x32xf32, #tpu.memory_space<vmem>>, vector<1x32xf32>
    %7 = vector.broadcast %6 : vector<1x32xf32> to vector<2x32xf32>
    %8 = arith.addf %5, %7 : vector<2x32xf32>
    %c0_10 = arith.constant 0 : index
    %c0_11 = arith.constant 0 : index
    %9 = vector.load %arg7[%c0_10, %c0_11] : memref<1x32xf32, #tpu.memory_space<vmem>>, vector<1x32xf32>
    %10 = vector.broadcast %9 : vector<1x32xf32> to vector<2x32xf32>
    %11 = arith.mulf %3, %10 : vector<2x32xf32>
    %c0_12 = arith.constant 0 : index
    %c0_13 = arith.constant 0 : index
    %c0_14 = arith.constant 0 : index
    %12 = vector.load %arg6[%c0_12, %c0_13, %c0_14] : memref<2x32x32xf32, #tpu.memory_space<vmem>>, vector<1x32x32xf32>
    %13 = vector.shape_cast %12 : vector<1x32x32xf32> to vector<32x32xf32>
    %cst_15 = arith.constant dense<0.000000e+00> : vector<2x32xf32>
    %14 = tpu.matmul %11, %13, %cst_15 {dimension_numbers = #tpu.dot_dimension_numbers<[1], [0], [0], [1], [0, 0, 1, 1], [], []>} : vector<2x32xf32>, vector<32x32xf32>, vector<2x32xf32> -> vector<2x32xf32>
    %c1 = arith.constant 1 : index
    %c0_16 = arith.constant 0 : index
    %c0_17 = arith.constant 0 : index
    %15 = vector.load %arg6[%c1, %c0_16, %c0_17] : memref<2x32x32xf32, #tpu.memory_space<vmem>>, vector<1x32x32xf32>
    %16 = vector.shape_cast %15 : vector<1x32x32xf32> to vector<32x32xf32>
    %cst_18 = arith.constant dense<0.000000e+00> : vector<2x32xf32>
    %17 = tpu.matmul %11, %16, %cst_18 {dimension_numbers = #tpu.dot_dimension_numbers<[1], [0], [0], [1], [0, 0, 1, 1], [], []>} : vector<2x32xf32>, vector<32x32xf32>, vector<2x32xf32> -> vector<2x32xf32>
    %18 = arith.mulf %8, %14 : vector<2x32xf32>
    %19 = arith.addf %18, %17 : vector<2x32xf32>
    %c0_19 = arith.constant 0 : index
    %c0_20 = arith.constant 0 : index
    %c0_21 = arith.constant 0 : index
    %20 = vector.load %arg9[%c0_19, %c0_20, %c0_21] : memref<2x1x32xf32, #tpu.memory_space<vmem>>, vector<2x1x32xf32>
    %21 = vector.shape_cast %20 : vector<2x1x32xf32> to vector<2x32xf32>
    %22 = vector.shape_cast %19 : vector<2x32xf32> to vector<2x1x32xf32>
    tpu.vector_store %arg9[%c0_19, %c0_20, %c0_21], %22 {strides = array<i32>} : memref<2x1x32xf32, #tpu.memory_space<vmem>>, vector<2x1x32xf32>,
    %c0_22 = arith.constant 0 : index
    %c0_23 = arith.constant 0 : index
    %c0_24 = arith.constant 0 : index
    %23 = vector.load %arg9[%c0_22, %c0_23, %c0_24] : memref<2x1x32xf32, #tpu.memory_space<vmem>>, vector<2x1x32xf32>
    %24 = vector.broadcast %23 : vector<2x1x32xf32> to vector<2x196x32xf32>
    %25 = arith.mulf %1, %24 : vector<2x196x32xf32>
    %cst_25 = arith.constant dense<0.000000e+00> : vector<2x196xf32>
    %26 = vector.multi_reduction <add>, %25, %cst_25 [2] : vector<2x196x32xf32> to vector<2x196xf32>
    %27 = vector.shape_cast %26 : vector<2x196xf32> to vector<2x196x1xf32>
    %cst_26 = arith.constant dense<0xFF800000> : vector<2x1xf32>
    %28 = vector.multi_reduction <maximumf>, %27, %cst_26 [1] : vector<2x196x1xf32> to vector<2x1xf32>
    %29 = vector.shape_cast %28 : vector<2x1xf32> to vector<2x1x1xf32>
    %30 = vector.broadcast %29 : vector<2x1x1xf32> to vector<2x196x1xf32>
    %31 = arith.subf %27, %30 : vector<2x196x1xf32>
    %32 = math.exp %31 : vector<2x196x1xf32>
    %cst_27 = arith.constant dense<0.000000e+00> : vector<2x1xf32>
    %33 = vector.multi_reduction <add>, %32, %cst_27 [1] : vector<2x196x1xf32> to vector<2x1xf32>
    %34 = vector.shape_cast %33 : vector<2x1xf32> to vector<2x1x1xf32>
    %35 = vector.broadcast %32 : vector<2x196x1xf32> to vector<2x196x32xf32>
    %36 = arith.mulf %1, %35 : vector<2x196x32xf32>
    %cst_28 = arith.constant dense<0.000000e+00> : vector<2x32xf32>
    %37 = vector.multi_reduction <add>, %36, %cst_28 [1] : vector<2x196x32xf32> to vector<2x32xf32>
    %38 = vector.shape_cast %37 : vector<2x32xf32> to vector<2x1x32xf32>
    %39 = tpu.reciprocal %34 {approx = true} : vector<2x1x1xf32> -> vector<2x1x1xf32>
    %40 = vector.broadcast %39 : vector<2x1x1xf32> to vector<2x1x32xf32>
    %41 = arith.mulf %38, %40 : vector<2x1x32xf32>
    %c0_29 = arith.constant 0 : index
    %c0_30 = arith.constant 0 : index
    %c0_31 = arith.constant 0 : index
    %42 = vector.load %arg9[%c0_29, %c0_30, %c0_31] : memref<2x1x32xf32, #tpu.memory_space<vmem>>, vector<2x1x32xf32>
    tpu.vector_store %arg9[%c0_29, %c0_30, %c0_31], %41 {strides = array<i32>} : memref<2x1x32xf32, #tpu.memory_space<vmem>>, vector<2x1x32xf32>,
    %c0_32 = arith.constant 0 : index
    %c0_33 = arith.constant 0 : index
    %c0_34 = arith.constant 0 : index
    %43 = vector.load %arg9[%c0_32, %c0_33, %c0_34] : memref<2x1x32xf32, #tpu.memory_space<vmem>>, vector<2x1x32xf32>
    %44 = vector.shape_cast %43 : vector<2x1x32xf32> to vector<2x32xf32>
    %c0_35 = arith.constant 0 : index
    %c0_36 = arith.constant 0 : index
    %45 = vector.load %arg8[%c0_35, %c0_36] : memref<2x32xf32, #tpu.memory_space<vmem>>, vector<2x32xf32>
    tpu.vector_store %arg8[%c0_35, %c0_36], %44 {strides = array<i32>} : memref<2x32xf32, #tpu.memory_space<vmem>>, vector<2x32xf32>,
    return
  }
  func.func @transform_0(%arg0: i32) -> (i32, i32, i32) {
    %c0_i32 = arith.constant 0 : i32
    %c0_i32_0 = arith.constant 0 : i32
    %c0_i32_1 = arith.constant 0 : i32
    return %arg0, %c0_i32, %c0_i32_0 : i32, i32, i32
  }
  func.func @transform_1(%arg0: i32) -> (i32, i32) {
    %c0_i32 = arith.constant 0 : i32
    %c0_i32_0 = arith.constant 0 : i32
    return %arg0, %c0_i32 : i32, i32
  }
  func.func @transform_2(%arg0: i32) -> (i32, i32) {
    %c0_i32 = arith.constant 0 : i32
    %c0_i32_0 = arith.constant 0 : i32
    return %arg0, %c0_i32 : i32, i32
  }
  func.func @transform_3(%arg0: i32) -> (i32, i32) {
    %c0_i32 = arith.constant 0 : i32
    %c0_i32_0 = arith.constant 0 : i32
    %c0_i32_1 = arith.constant 0 : i32
    return %c0_i32, %c0_i32_0 : i32, i32
  }
  func.func @transform_4(%arg0: i32) -> (i32, i32) {
    %c0_i32 = arith.constant 0 : i32
    %c0_i32_0 = arith.constant 0 : i32
    %c0_i32_1 = arith.constant 0 : i32
    return %c0_i32, %c0_i32_0 : i32, i32
  }
  func.func @transform_5(%arg0: i32) -> (i32, i32, i32) {
    %c0_i32 = arith.constant 0 : i32
    %c0_i32_0 = arith.constant 0 : i32
    %c0_i32_1 = arith.constant 0 : i32
    %c0_i32_2 = arith.constant 0 : i32
    return %c0_i32, %c0_i32_0, %c0_i32_1 : i32, i32, i32
  }
  func.func @transform_6(%arg0: i32) -> (i32, i32) {
    %c0_i32 = arith.constant 0 : i32
    %c0_i32_0 = arith.constant 0 : i32
    %c0_i32_1 = arith.constant 0 : i32
    return %c0_i32, %c0_i32_0 : i32, i32
  }
  func.func @transform_7(%arg0: i32) -> (i32, i32) {
    %c0_i32 = arith.constant 0 : i32
    %c0_i32_0 = arith.constant 0 : i32
    return %arg0, %c0_i32 : i32, i32
  }
}

</mosaic_0001>

<llo_original>
// kernel: tpu_custom_call.1
$region0: #{tpu_custom_call.1}
  #allocation0 [shape = 'u32[]', space=smem, size = 0x4, offset = 0x4, fixed_abs, tag = 'smem constant byte address 0x4 - core index']
  #allocation1 [shape = 'u32[72,128]{1,0:T(1,128)}', space=vmem, size = 0x9000, scoped, tag = 'internal scratch']
  #allocation2 [shape = 'f32[2,1,32]{2,1,0:T(1,128)}', space=vmem, size = 0x400, scoped, tag = 'scratch operand']
  %s0 = inlined_call_operand.hbm [shape: f32[2,32,196], index: 0, kind: input, shape index: {}]
  %s1 = inlined_call_operand.hbm [shape: f32[2,32], index: 1, kind: input, shape index: {}]
  %s2 = inlined_call_operand.hbm [shape: f32[2,32], index: 2, kind: input, shape index: {}]
  %s3 = inlined_call_operand.hbm [shape: f32[32,32], index: 3, kind: input, shape index: {}]
  %s4 = inlined_call_operand.vmem [shape: f32[1,32], index: 4, kind: input, shape index: {}]
  %s5 = inlined_call_operand.hbm [shape: f32[2,32,32], index: 5, kind: input, shape index: {}]
  %s6 = inlined_call_operand.vmem [shape: f32[1,32], index: 6, kind: input, shape index: {}]
  %s7 = inlined_call_operand.hbm [shape: f32[2,32], index: 7, kind: output, shape index: {}]
  %s8 = sld [smem:[#allocation0]]
  $region58: #{tpu_custom_call.1} parent=0
    _
  %s10 = ssub.s32 1, %s8
  %s11 = scalar_select 0, %s10, %s8
  $region1: #{tpu_custom_call.1} parent=0
    #allocation3 [shape = 'u8[65536]{0}', space=vmem, size = 0x10000, scoped, tag = 'input window, operand 0, single buffered']
    #allocation4 [shape = 's32[1]{0}', space=sflag, size = 0x4, scoped, tag = 'scoped memory for tpu_custom_call.1']
    #allocation5 [shape = 's32[1]{0}', space=sflag, size = 0x4, scoped, tag = 'scoped memory for tpu_custom_call.1']
    #allocation6 [shape = 'u8[1024]{0}', space=vmem, size = 0x400, scoped, tag = 'input window, operand 1, single buffered']
    #allocation7 [shape = 's32[1]{0}', space=sflag, size = 0x4, scoped, tag = 'scoped memory for tpu_custom_call.1']
    #allocation8 [shape = 'u8[1024]{0}', space=vmem, size = 0x400, scoped, tag = 'input window, operand 2, single buffered']
    #allocation9 [shape = 'u8[16384]{0}', space=vmem, size = 0x4000, scoped, tag = 'input window, operand 3, single buffered']
    #allocation10 [shape = 's32[1]{0}', space=sflag, size = 0x4, scoped, tag = 'scoped memory for tpu_custom_call.1']
    #allocation11 [shape = 'u8[32768]{0}', space=vmem, size = 0x8000, scoped, tag = 'input window, operand 5, single buffered']
    #allocation12 [shape = 'u8[1024]{0}', space=vmem, size = 0x400, scoped, tag = 'output window, operand 0, single buffered']
    %12 = vsyncpa [#allocation4], 0
    %13 = vsyncpa [#allocation7], 0
    %14 = vsyncpa [#allocation10], 0
    %15 = vsyncpa [#allocation5], 0
    // Predicated region
    $region2: #{tpu_custom_call.1} parent=1 // pred_check
      _
    $region3: #{tpu_custom_call.1} parent=1 // pred_check_branch
      %17 = sbr.rel (0) target = $region5
    $region4: #{tpu_custom_call.1} parent=1 // pred_region
      %19 = vsyncadd [#allocation4], 0
      %s20 = sshll.u32 %s0, 4
      %s21 = int_to_ptr.hbm [resolvable:$true] %s20
      %s22 = sshll.u32 [#allocation3], 4
      %s23 = int_to_ptr.vmem [resolvable:$true] %s22
      %28 = dma.hbm_to_vmem [thread:$0]  %s21, 2048, %s23, [#allocation4], 256, 256, 16
    $region5: #{tpu_custom_call.1} parent=1 // pred_fallthru
      _
    // Predicated region
    $region6: #{tpu_custom_call.1} parent=1 // pred_check
      _
    $region7: #{tpu_custom_call.1} parent=1 // pred_check_branch
      %30 = sbr.rel (0) target = $region9
    $region8: #{tpu_custom_call.1} parent=1 // pred_region
      %32 = vsyncadd [#allocation7], 0
      %s34 = sshll.u32 %s1, 4
      %s35 = int_to_ptr.hbm [resolvable:$true] %s34
      %s36 = sshll.u32 [#allocation6], 4
      %s37 = int_to_ptr.vmem [resolvable:$true] %s36
      %39 = dma.hbm_to_vmem [thread:$0]  %s35, 32, %s37, [#allocation7]
    $region9: #{tpu_custom_call.1} parent=1 // pred_fallthru
      _
    // Predicated region
    $region10: #{tpu_custom_call.1} parent=1 // pred_check
      _
    $region11: #{tpu_custom_call.1} parent=1 // pred_check_branch
      %41 = sbr.rel (0) target = $region13
    $region12: #{tpu_custom_call.1} parent=1 // pred_region
      %43 = vsyncadd [#allocation7], 0
      %s45 = sshll.u32 %s2, 4
      %s46 = int_to_ptr.hbm [resolvable:$true] %s45
      %s47 = sshll.u32 [#allocation8], 4
      %s48 = int_to_ptr.vmem [resolvable:$true] %s47
      %50 = dma.hbm_to_vmem [thread:$0]  %s46, 32, %s48, [#allocation7]
    $region13: #{tpu_custom_call.1} parent=1 // pred_fallthru
      _
    // Predicated region
    $region14: #{tpu_custom_call.1} parent=1 // pred_check
      _
    $region15: #{tpu_custom_call.1} parent=1 // pred_check_branch
      %52 = sbr.rel (0) target = $region17
    $region16: #{tpu_custom_call.1} parent=1 // pred_region
      %54 = vsyncadd [#allocation10], 0
      %s55 = sshll.u32 %s3, 4
      %s56 = int_to_ptr.hbm [resolvable:$true] %s55
      %s57 = sshll.u32 [#allocation9], 4
      %s58 = int_to_ptr.vmem [resolvable:$true] %s57
      %63 = dma.hbm_to_vmem [thread:$0]  %s56, 512, %s58, [#allocation10], 128, 128, 8
    $region17: #{tpu_custom_call.1} parent=1 // pred_fallthru
      _
    // Predicated region
    $region18: #{tpu_custom_call.1} parent=1 // pred_check
      _
    $region19: #{tpu_custom_call.1} parent=1 // pred_check_branch
      %65 = sbr.rel (0) target = $region21
    $region20: #{tpu_custom_call.1} parent=1 // pred_region
      _
    $region21: #{tpu_custom_call.1} parent=1 // pred_fallthru
      _
    // Predicated region
    $region22: #{tpu_custom_call.1} parent=1 // pred_check
      _
    $region23: #{tpu_custom_call.1} parent=1 // pred_check_branch
      %67 = sbr.rel (0) target = $region25
    $region24: #{tpu_custom_call.1} parent=1 // pred_region
      %69 = vsyncadd [#allocation10], 0
      %s70 = sshll.u32 %s5, 4
      %s71 = int_to_ptr.hbm [resolvable:$true] %s70
      %s72 = sshll.u32 [#allocation11], 4
      %s73 = int_to_ptr.vmem [resolvable:$true] %s72
      %78 = dma.hbm_to_vmem [thread:$0]  %s71, 1024, %s73, [#allocation10], 128, 128, 8
    $region25: #{tpu_custom_call.1} parent=1 // pred_fallthru
      _
    // Predicated region
    $region26: #{tpu_custom_call.1} parent=1 // pred_check
      _
    $region27: #{tpu_custom_call.1} parent=1 // pred_check_branch
      %80 = sbr.rel (0) target = $region29
    $region28: #{tpu_custom_call.1} parent=1 // pred_region
      _
    $region29: #{tpu_custom_call.1} parent=1 // pred_fallthru
      _
    // Predicated region
    $region30: #{tpu_custom_call.1} parent=1 // pred_check
      _
    $region31: #{tpu_custom_call.1} parent=1 // pred_check_branch
      %82 = sbr.rel (0) target = $region33
    $region32: #{tpu_custom_call.1} parent=1 // pred_region
      %84 = dma.done [#allocation4], 2048
    $region33: #{tpu_custom_call.1} parent=1 // pred_fallthru
      _
    // Predicated region
    $region34: #{tpu_custom_call.1} parent=1 // pred_check
      _
    $region35: #{tpu_custom_call.1} parent=1 // pred_check_branch
      %86 = sbr.rel (0) target = $region37
    $region36: #{tpu_custom_call.1} parent=1 // pred_region
      %88 = dma.done [#allocation7], 32
    $region37: #{tpu_custom_call.1} parent=1 // pred_fallthru
      _
    // Predicated region
    $region38: #{tpu_custom_call.1} parent=1 // pred_check
      _
    $region39: #{tpu_custom_call.1} parent=1 // pred_check_branch
      %90 = sbr.rel (0) target = $region41
    $region40: #{tpu_custom_call.1} parent=1 // pred_region
      %92 = dma.done [#allocation7], 32
    $region41: #{tpu_custom_call.1} parent=1 // pred_fallthru
      _
    // Predicated region
    $region42: #{tpu_custom_call.1} parent=1 // pred_check
      _
    $region43: #{tpu_custom_call.1} parent=1 // pred_check_branch
      %94 = sbr.rel (0) target = $region45
    $region44: #{tpu_custom_call.1} parent=1 // pred_region
      %96 = dma.done [#allocation10], 512
    $region45: #{tpu_custom_call.1} parent=1 // pred_fallthru
      _
    // Predicated region
    $region46: #{tpu_custom_call.1} parent=1 // pred_check
      _
    $region47: #{tpu_custom_call.1} parent=1 // pred_check_branch
      %98 = sbr.rel (0) target = $region49
    $region48: #{tpu_custom_call.1} parent=1 // pred_region
      %100 = dma.done [#allocation10], 1024
    $region49: #{tpu_custom_call.1} parent=1 // pred_fallthru
      _
    %v101 = vld [vmem:[#allocation3] sm:$0xff]
    %v102 = vld [vmem:[#allocation3 + $0x8] sm:$0xff]
    %v103 = vld [vmem:[#allocation3 + $0x10] sm:$0xff]
    %v104 = vld [vmem:[#allocation3 + $0x18] sm:$0xff]
    %v105 = vld [vmem:[#allocation3 + $0x20] sm:$0xff]
    %v106 = vld [vmem:[#allocation3 + $0x28] sm:$0xff]
    %v107 = vld [vmem:[#allocation3 + $0x30] sm:$0xff]
    %v108 = vld [vmem:[#allocation3 + $0x38] sm:$0xff]
    %v109 = vld [vmem:[#allocation3 + $0x40] sm:$0xff]
    %v110 = vld [vmem:[#allocation3 + $0x48] sm:$0xff]
    %v111 = vld [vmem:[#allocation3 + $0x50] sm:$0xff]
    %v112 = vld [vmem:[#allocation3 + $0x58] sm:$0xff]
    %v113 = vld [vmem:[#allocation3 + $0x60] sm:$0xff]
    %v114 = vld [vmem:[#allocation3 + $0x68] sm:$0xff]
    %v115 = vld [vmem:[#allocation3 + $0x70] sm:$0xff]
    %v116 = vld [vmem:[#allocation3 + $0x78] sm:$0xff]
    %117 = vxpose.xlu0.b32.start [1/16] %v101, 128
    %118 = vxpose.xlu0.b32.cont [2/16] %v103, 128
    %119 = vxpose.xlu0.b32.cont [3/16] %v105, 128
    %120 = vxpose.xlu0.b32.cont [4/16] %v107, 128
    %121 = vxpose.xlu0.b32.cont [5/16] 0.0, 128
    %122 = vxpose.xlu0.b32.cont [6/16] 0.0, 128
    %123 = vxpose.xlu0.b32.cont [7/16] 0.0, 128
    %124 = vxpose.xlu0.b32.cont [8/16] 0.0, 128
    %125 = vxpose.xlu0.b32.cont [9/16] 0.0, 128
    %126 = vxpose.xlu0.b32.cont [10/16] 0.0, 128
    %127 = vxpose.xlu0.b32.cont [11/16] 0.0, 128
    %128 = vxpose.xlu0.b32.cont [12/16] 0.0, 128
    %129 = vxpose.xlu0.b32.cont [13/16] 0.0, 128
    %130 = vxpose.xlu0.b32.cont [14/16] 0.0, 128
    %131 = vxpose.xlu0.b32.cont [15/16] 0.0, 128
    %132 = vxpose.xlu0.b32.end [16/16] 0.0, 128
    %v133 = vpop.trf.xlu0
    %v134 = vpop.trf.xlu0
    %v135 = vpop.trf.xlu0
    %v136 = vpop.trf.xlu0
    %v137 = vpop.trf.xlu0
    %v138 = vpop.trf.xlu0
    %v139 = vpop.trf.xlu0
    %v140 = vpop.trf.xlu0
    %v141 = vpop.trf.xlu0
    %v142 = vpop.trf.xlu0
    %v143 = vpop.trf.xlu0
    %v144 = vpop.trf.xlu0
    %v145 = vpop.trf.xlu0
    %v146 = vpop.trf.xlu0
    %v147 = vpop.trf.xlu0
    %v148 = vpop.trf.xlu0
    %149 = vxpose.xlu0.b32.start [1/16] %v102, 128
    %150 = vxpose.xlu0.b32.cont [2/16] %v104, 128
    %151 = vxpose.xlu0.b32.cont [3/16] %v106, 128
    %152 = vxpose.xlu0.b32.cont [4/16] %v108, 128
    %153 = vxpose.xlu0.b32.cont [5/16] 0.0, 128
    %154 = vxpose.xlu0.b32.cont [6/16] 0.0, 128
    %155 = vxpose.xlu0.b32.cont [7/16] 0.0, 128
    %156 = vxpose.xlu0.b32.cont [8/16] 0.0, 128
    %157 = vxpose.xlu0.b32.cont [9/16] 0.0, 128
    %158 = vxpose.xlu0.b32.cont [10/16] 0.0, 128
    %159 = vxpose.xlu0.b32.cont [11/16] 0.0, 128
    %160 = vxpose.xlu0.b32.cont [12/16] 0.0, 128
    %161 = vxpose.xlu0.b32.cont [13/16] 0.0, 128
    %162 = vxpose.xlu0.b32.cont [14/16] 0.0, 128
    %163 = vxpose.xlu0.b32.cont [15/16] 0.0, 128
    %164 = vxpose.xlu0.b32.end [16/16] 0.0, 128
    %v165 = vpop.trf.xlu0
    %v166 = vpop.trf.xlu0
    %v167 = vpop.trf.xlu0
    %v168 = vpop.trf.xlu0
    %v169 = vpop.trf.xlu0
    %v170 = vpop.trf.xlu0
    %v171 = vpop.trf.xlu0
    %v172 = vpop.trf.xlu0
    %v173 = vpop.trf.xlu0
    %v174 = vpop.trf.xlu0
    %v175 = vpop.trf.xlu0
    %v176 = vpop.trf.xlu0
    %v177 = vpop.trf.xlu0
    %v178 = vpop.trf.xlu0
    %v179 = vpop.trf.xlu0
    %v180 = vpop.trf.xlu0
    %181 = vxpose.xlu0.b32.start [1/16] %v109, 128
    %182 = vxpose.xlu0.b32.cont [2/16] %v111, 128
    %183 = vxpose.xlu0.b32.cont [3/16] %v113, 128
    %184 = vxpose.xlu0.b32.cont [4/16] %v115, 128
    %185 = vxpose.xlu0.b32.cont [5/16] 0.0, 128
    %186 = vxpose.xlu0.b32.cont [6/16] 0.0, 128
    %187 = vxpose.xlu0.b32.cont [7/16] 0.0, 128
    %188 = vxpose.xlu0.b32.cont [8/16] 0.0, 128
    %189 = vxpose.xlu0.b32.cont [9/16] 0.0, 128
    %190 = vxpose.xlu0.b32.cont [10/16] 0.0, 128
    %191 = vxpose.xlu0.b32.cont [11/16] 0.0, 128
    %192 = vxpose.xlu0.b32.cont [12/16] 0.0, 128
    %193 = vxpose.xlu0.b32.cont [13/16] 0.0, 128
    %194 = vxpose.xlu0.b32.cont [14/16] 0.0, 128
    %195 = vxpose.xlu0.b32.cont [15/16] 0.0, 128
    %196 = vxpose.xlu0.b32.end [16/16] 0.0, 128
    %v197 = vpop.trf.xlu0
    %v198 = vpop.trf.xlu0
    %v199 = vpop.trf.xlu0
    %v200 = vpop.trf.xlu0
    %v201 = vpop.trf.xlu0
    %v202 = vpop.trf.xlu0
    %v203 = vpop.trf.xlu0
    %v204 = vpop.trf.xlu0
    %v205 = vpop.trf.xlu0
    %v206 = vpop.trf.xlu0
    %v207 = vpop.trf.xlu0
    %v208 = vpop.trf.xlu0
    %v209 = vpop.trf.xlu0
    %v210 = vpop.trf.xlu0
    %v211 = vpop.trf.xlu0
    %v212 = vpop.trf.xlu0
    %213 = vxpose.xlu0.b32.start [1/16] %v110, 128
    %214 = vxpose.xlu0.b32.cont [2/16] %v112, 128
    %215 = vxpose.xlu0.b32.cont [3/16] %v114, 128
    %216 = vxpose.xlu0.b32.cont [4/16] %v116, 128
    %217 = vxpose.xlu0.b32.cont [5/16] 0.0, 128
    %218 = vxpose.xlu0.b32.cont [6/16] 0.0, 128
    %219 = vxpose.xlu0.b32.cont [7/16] 0.0, 128
    %220 = vxpose.xlu0.b32.cont [8/16] 0.0, 128
    %221 = vxpose.xlu0.b32.cont [9/16] 0.0, 128
    %222 = vxpose.xlu0.b32.cont [10/16] 0.0, 128
    %223 = vxpose.xlu0.b32.cont [11/16] 0.0, 128
    %224 = vxpose.xlu0.b32.cont [12/16] 0.0, 128
    %225 = vxpose.xlu0.b32.cont [13/16] 0.0, 128
    %226 = vxpose.xlu0.b32.cont [14/16] 0.0, 128
    %227 = vxpose.xlu0.b32.cont [15/16] 0.0, 128
    %228 = vxpose.xlu0.b32.end [16/16] 0.0, 128
    %v229 = vpop.trf.xlu0
    %v230 = vpop.trf.xlu0
    %v231 = vpop.trf.xlu0
    %v232 = vpop.trf.xlu0
    %v233 = vpop.trf.xlu0
    %v234 = vpop.trf.xlu0
    %v235 = vpop.trf.xlu0
    %v236 = vpop.trf.xlu0
    %v237 = vpop.trf.xlu0
    %v238 = vpop.trf.xlu0
    %v239 = vpop.trf.xlu0
    %v240 = vpop.trf.xlu0
    %v241 = vpop.trf.xlu0
    %v242 = vpop.trf.xlu0
    %v243 = vpop.trf.xlu0
    %v244 = vpop.trf.xlu0
    %v245 = vld [vmem:[#allocation6] sm:$0x3]
    %v246 = vld [vmem:[#allocation8] sm:$0x3]
    %v247 = vld [vmem:[#allocation9] sm:$0xff]
    %v248 = vld [vmem:[#allocation9 + $0x8] sm:$0xff]
    %v249 = vld [vmem:[#allocation9 + $0x10] sm:$0xff]
    %v250 = vld [vmem:[#allocation9 + $0x18] sm:$0xff]
    %v251 = vld [vmem:[%s4] sm:$0x1]
    %v253 = vperm.slane %v251, 0
    %vm255 = vcmask 261120
    %v257 = vsel %vm255, %v245, 0
    %259 = vmatpush.msra.mxu0 0.0
    %260 = vmatpush.msra.mxu0 0.0
    %261 = vmatpush.msra.mxu0 0.0
    %262 = vmatpush.msra.mxu0 0.0
    %263 = vmatpush.msra.mxu0 0.0
    %264 = vmatpush.msra.mxu0 0.0
    %265 = vmatpush.msra.mxu0 0.0
    %266 = vmatpush.msra.mxu0 0.0
    %267 = vmatpush.msra.mxu0 0.0
    %268 = vmatpush.msra.mxu0 0.0
    %269 = vmatpush.msra.mxu0 0.0
    %270 = vmatpush.msra.mxu0 0.0
    %271 = vmatpush.msra.mxu0 %v250
    %272 = vmatpush.msra.mxu0 %v249
    %273 = vmatpush.msra.mxu0 %v248
    %274 = vmatpush.msra.mxu0 %v247
    %275 = vmatmul.f32.gmra.mxu0 %v257
    %v276 = vpop.f32.mrf.mxu0
    %v277 = vadd.f32 %v253, %v276
    %278 = vdwg.mxu0
    %v279 = vld [vmem:[%s6] sm:$0x1]
    %v281 = vperm.slane %v279, 0
    %v283 = vmul.f32 %v246, %v281
    %v284 = vld [vmem:[#allocation11] sm:$0xff]
    %v285 = vld [vmem:[#allocation11 + $0x8] sm:$0xff]
    %v286 = vld [vmem:[#allocation11 + $0x10] sm:$0xff]
    %v287 = vld [vmem:[#allocation11 + $0x18] sm:$0xff]
    %v289 = vsel %vm255, %v283, 0
    %291 = vmatpush.msra.mxu0 0.0
    %292 = vmatpush.msra.mxu0 0.0
    %293 = vmatpush.msra.mxu0 0.0
    %294 = vmatpush.msra.mxu0 0.0
    %295 = vmatpush.msra.mxu0 0.0
    %296 = vmatpush.msra.mxu0 0.0
    %297 = vmatpush.msra.mxu0 0.0
    %298 = vmatpush.msra.mxu0 0.0
    %299 = vmatpush.msra.mxu0 0.0
    %300 = vmatpush.msra.mxu0 0.0
    %301 = vmatpush.msra.mxu0 0.0
    %302 = vmatpush.msra.mxu0 0.0
    %303 = vmatpush.msra.mxu0 %v287
    %304 = vmatpush.msra.mxu0 %v286
    %305 = vmatpush.msra.mxu0 %v285
    %306 = vmatpush.msra.mxu0 %v284
    %307 = vmatmul.f32.gmra.mxu0 %v289
    %v308 = vpop.f32.mrf.mxu0
    %v309 = vadd.f32 0.0, %v308
    %310 = vdwg.mxu0
    %s311 = scalar_lea.vmem [#allocation11], 32
    %v312 = vld [vmem:[%s311] sm:$0xff]
    %v313 = vld [vmem:[%s311 + $0x8] sm:$0xff]
    %v314 = vld [vmem:[%s311 + $0x10] sm:$0xff]
    %v315 = vld [vmem:[%s311 + $0x18] sm:$0xff]
    %316 = vmatpush.msra.mxu0 0.0
    %317 = vmatpush.msra.mxu0 0.0
    %318 = vmatpush.msra.mxu0 0.0
    %319 = vmatpush.msra.mxu0 0.0
    %320 = vmatpush.msra.mxu0 0.0
    %321 = vmatpush.msra.mxu0 0.0
    %322 = vmatpush.msra.mxu0 0.0
    %323 = vmatpush.msra.mxu0 0.0
    %324 = vmatpush.msra.mxu0 0.0
    %325 = vmatpush.msra.mxu0 0.0
    %326 = vmatpush.msra.mxu0 0.0
    %327 = vmatpush.msra.mxu0 0.0
    %328 = vmatpush.msra.mxu0 %v315
    %329 = vmatpush.msra.mxu0 %v314
    %330 = vmatpush.msra.mxu0 %v313
    %331 = vmatpush.msra.mxu0 %v312
    %332 = vmatmul.f32.gmra.mxu0 %v289
    %v333 = vpop.f32.mrf.mxu0
    %v334 = vadd.f32 0.0, %v333
    %335 = vdwg.mxu0
    %v336 = vmul.f32 %v277, %v309
    %v337 = vadd.f32 %v336, %v334
    %v339 = vrot.slane %v337, 1
    %vm341 = vcmask 253952
    %342 = vst.msk [vmem:[#allocation2] sm:$0x1] %vm341, %v337
    %343 = vst.msk [vmem:[#allocation2 + $0x1] sm:$0x1] %vm341, %v339
    %v344 = vld [vmem:[#allocation2] sm:$0x1]
    %v345 = vld [vmem:[#allocation2 + $0x1] sm:$0x1]
    %v348 = vperm.slane %v344, 0
    %v349 = vperm.slane %v345, 0
    %v352 = vmul.f32 %v133, %v348
    %v353 = vmul.f32 %v134, %v348
    %v354 = vmul.f32 %v135, %v348
    %v355 = vmul.f32 %v136, %v348
    %v356 = vmul.f32 %v137, %v348
    %v357 = vmul.f32 %v138, %v348
    %v358 = vmul.f32 %v139, %v348
    %v359 = vmul.f32 %v140, %v348
    %v360 = vmul.f32 %v141, %v348
    %v361 = vmul.f32 %v142, %v348
    %v362 = vmul.f32 %v143, %v348
    %v363 = vmul.f32 %v144, %v348
    %v364 = vmul.f32 %v145, %v348
    %v365 = vmul.f32 %v146, %v348
    %v366 = vmul.f32 %v147, %v348
    %v367 = vmul.f32 %v148, %v348
    %v368 = vmul.f32 %v165, %v348
    %v369 = vmul.f32 %v166, %v348
    %v370 = vmul.f32 %v167, %v348
    %v371 = vmul.f32 %v168, %v348
    %v372 = vmul.f32 %v169, %v348
    %v373 = vmul.f32 %v170, %v348
    %v374 = vmul.f32 %v171, %v348
    %v375 = vmul.f32 %v172, %v348
    %v376 = vmul.f32 %v173, %v348
    %v377 = vmul.f32 %v197, %v349
    %v378 = vmul.f32 %v198, %v349
    %v379 = vmul.f32 %v199, %v349
    %v380 = vmul.f32 %v200, %v349
    %v381 = vmul.f32 %v201, %v349
    %v382 = vmul.f32 %v202, %v349
    %v383 = vmul.f32 %v203, %v349
    %v384 = vmul.f32 %v204, %v349
    %v385 = vmul.f32 %v205, %v349
    %v386 = vmul.f32 %v206, %v349
    %v387 = vmul.f32 %v207, %v349
    %v388 = vmul.f32 %v208, %v349
    %v389 = vmul.f32 %v209, %v349
    %v390 = vmul.f32 %v210, %v349
    %v391 = vmul.f32 %v211, %v349
    %v392 = vmul.f32 %v212, %v349
    %v393 = vmul.f32 %v229, %v349
    %v394 = vmul.f32 %v230, %v349
    %v395 = vmul.f32 %v231, %v349
    %v396 = vmul.f32 %v232, %v349
    %v397 = vmul.f32 %v233, %v349
    %v398 = vmul.f32 %v234, %v349
    %v399 = vmul.f32 %v235, %v349
    %v400 = vmul.f32 %v236, %v349
    %v401 = vmul.f32 %v237, %v349
    %v402 = vsel %vm255, %v352, 0.0
    %403 = vadd.xlane.f32.xlu0 %v402
    %v404 = vpop.xlane.xlu0 %403
    %v405 = vsel %vm255, %v353, 0.0
    %406 = vadd.xlane.f32.xlu0 %v405
    %v407 = vpop.xlane.xlu0 %406
    %v408 = vsel %vm255, %v354, 0.0
    %409 = vadd.xlane.f32.xlu0 %v408
    %v410 = vpop.xlane.xlu0 %409
    %v411 = vsel %vm255, %v355, 0.0
    %412 = vadd.xlane.f32.xlu0 %v411
    %v413 = vpop.xlane.xlu0 %412
    %v414 = vsel %vm255, %v356, 0.0
    %415 = vadd.xlane.f32.xlu0 %v414
    %v416 = vpop.xlane.xlu0 %415
    %v417 = vsel %vm255, %v357, 0.0
    %418 = vadd.xlane.f32.xlu0 %v417
    %v419 = vpop.xlane.xlu0 %418
    %v420 = vsel %vm255, %v358, 0.0
    %421 = vadd.xlane.f32.xlu0 %v420
    %v422 = vpop.xlane.xlu0 %421
    %v423 = vsel %vm255, %v359, 0.0
    %424 = vadd.xlane.f32.xlu0 %v423
    %v425 = vpop.xlane.xlu0 %424
    %v426 = vsel %vm255, %v360, 0.0
    %427 = vadd.xlane.f32.xlu0 %v426
    %v428 = vpop.xlane.xlu0 %427
    %v429 = vsel %vm255, %v361, 0.0
    %430 = vadd.xlane.f32.xlu0 %v429
    %v431 = vpop.xlane.xlu0 %430
    %v432 = vsel %vm255, %v362, 0.0
    %433 = vadd.xlane.f32.xlu0 %v432
    %v434 = vpop.xlane.xlu0 %433
    %v435 = vsel %vm255, %v363, 0.0
    %436 = vadd.xlane.f32.xlu0 %v435
    %v437 = vpop.xlane.xlu0 %436
    %v438 = vsel %vm255, %v364, 0.0
    %439 = vadd.xlane.f32.xlu0 %v438
    %v440 = vpop.xlane.xlu0 %439
    %v441 = vsel %vm255, %v365, 0.0
    %442 = vadd.xlane.f32.xlu0 %v441
    %v443 = vpop.xlane.xlu0 %442
    %v444 = vsel %vm255, %v366, 0.0
    %445 = vadd.xlane.f32.xlu0 %v444
    %v446 = vpop.xlane.xlu0 %445
    %v447 = vsel %vm255, %v367, 0.0
    %448 = vadd.xlane.f32.xlu0 %v447
    %v449 = vpop.xlane.xlu0 %448
    %v450 = vsel %vm255, %v368, 0.0
    %451 = vadd.xlane.f32.xlu0 %v450
    %v452 = vpop.xlane.xlu0 %451
    %v453 = vsel %vm255, %v369, 0.0
    %454 = vadd.xlane.f32.xlu0 %v453
    %v455 = vpop.xlane.xlu0 %454
    %v456 = vsel %vm255, %v370, 0.0
    %457 = vadd.xlane.f32.xlu0 %v456
    %v458 = vpop.xlane.xlu0 %457
    %v459 = vsel %vm255, %v371, 0.0
    %460 = vadd.xlane.f32.xlu0 %v459
    %v461 = vpop.xlane.xlu0 %460
    %v462 = vsel %vm255, %v372, 0.0
    %463 = vadd.xlane.f32.xlu0 %v462
    %v464 = vpop.xlane.xlu0 %463
    %v465 = vsel %vm255, %v373, 0.0
    %466 = vadd.xlane.f32.xlu0 %v465
    %v467 = vpop.xlane.xlu0 %466
    %v468 = vsel %vm255, %v374, 0.0
    %469 = vadd.xlane.f32.xlu0 %v468
    %v470 = vpop.xlane.xlu0 %469
    %v471 = vsel %vm255, %v375, 0.0
    %472 = vadd.xlane.f32.xlu0 %v471
    %v473 = vpop.xlane.xlu0 %472
    %vm474 = vcmask 257024
    %v475 = vsel %vm474, %v376, 0.0
    %476 = vadd.xlane.f32.xlu0 %v475
    %v477 = vpop.xlane.xlu0 %476
    %v478 = vsel %vm255, %v377, 0.0
    %479 = vadd.xlane.f32.xlu0 %v478
    %v480 = vpop.xlane.xlu0 %479
    %v481 = vsel %vm255, %v378, 0.0
    %482 = vadd.xlane.f32.xlu0 %v481
    %v483 = vpop.xlane.xlu0 %482
    %v484 = vsel %vm255, %v379, 0.0
    %485 = vadd.xlane.f32.xlu0 %v484
    %v486 = vpop.xlane.xlu0 %485
    %v487 = vsel %vm255, %v380, 0.0
    %488 = vadd.xlane.f32.xlu0 %v487
    %v489 = vpop.xlane.xlu0 %488
    %v490 = vsel %vm255, %v381, 0.0
    %491 = vadd.xlane.f32.xlu0 %v490
    %v492 = vpop.xlane.xlu0 %491
    %v493 = vsel %vm255, %v382, 0.0
    %494 = vadd.xlane.f32.xlu0 %v493
    %v495 = vpop.xlane.xlu0 %494
    %v496 = vsel %vm255, %v383, 0.0
    %497 = vadd.xlane.f32.xlu0 %v496
    %v498 = vpop.xlane.xlu0 %497
    %v499 = vsel %vm255, %v384, 0.0
    %500 = vadd.xlane.f32.xlu0 %v499
    %v501 = vpop.xlane.xlu0 %500
    %v502 = vsel %vm255, %v385, 0.0
    %503 = vadd.xlane.f32.xlu0 %v502
    %v504 = vpop.xlane.xlu0 %503
    %v505 = vsel %vm255, %v386, 0.0
    %506 = vadd.xlane.f32.xlu0 %v505
    %v507 = vpop.xlane.xlu0 %506
    %v508 = vsel %vm255, %v387, 0.0
    %509 = vadd.xlane.f32.xlu0 %v508
    %v510 = vpop.xlane.xlu0 %509
    %v511 = vsel %vm255, %v388, 0.0
    %512 = vadd.xlane.f32.xlu0 %v511
    %v513 = vpop.xlane.xlu0 %512
    %v514 = vsel %vm255, %v389, 0.0
    %515 = vadd.xlane.f32.xlu0 %v514
    %v516 = vpop.xlane.xlu0 %515
    %v517 = vsel %vm255, %v390, 0.0
    %518 = vadd.xlane.f32.xlu0 %v517
    %v519 = vpop.xlane.xlu0 %518
    %v520 = vsel %vm255, %v391, 0.0
    %521 = vadd.xlane.f32.xlu0 %v520
    %v522 = vpop.xlane.xlu0 %521
    %v523 = vsel %vm255, %v392, 0.0
    %524 = vadd.xlane.f32.xlu0 %v523
    %v525 = vpop.xlane.xlu0 %524
    %v526 = vsel %vm255, %v393, 0.0
    %527 = vadd.xlane.f32.xlu0 %v526
    %v528 = vpop.xlane.xlu0 %527
    %v529 = vsel %vm255, %v394, 0.0
    %530 = vadd.xlane.f32.xlu0 %v529
    %v531 = vpop.xlane.xlu0 %530
    %v532 = vsel %vm255, %v395, 0.0
    %533 = vadd.xlane.f32.xlu0 %v532
    %v534 = vpop.xlane.xlu0 %533
    %v535 = vsel %vm255, %v396, 0.0
    %536 = vadd.xlane.f32.xlu0 %v535
    %v537 = vpop.xlane.xlu0 %536
    %v538 = vsel %vm255, %v397, 0.0
    %539 = vadd.xlane.f32.xlu0 %v538
    %v540 = vpop.xlane.xlu0 %539
    %v541 = vsel %vm255, %v398, 0.0
    %542 = vadd.xlane.f32.xlu0 %v541
    %v543 = vpop.xlane.xlu0 %542
    %v544 = vsel %vm255, %v399, 0.0
    %545 = vadd.xlane.f32.xlu0 %v544
    %v546 = vpop.xlane.xlu0 %545
    %v547 = vsel %vm255, %v400, 0.0
    %548 = vadd.xlane.f32.xlu0 %v547
    %v549 = vpop.xlane.xlu0 %548
    %v550 = vsel %vm474, %v401, 0.0
    %551 = vadd.xlane.f32.xlu0 %v550
    %v552 = vpop.xlane.xlu0 %551
    %v553 = vmax.f32 %v404, %v410
    %v554 = vmax.f32 %v407, %v413
    %v555 = vmax.f32 %v553, %v416
    %v556 = vmax.f32 %v554, %v419
    %v557 = vmax.f32 %v555, %v422
    %v558 = vmax.f32 %v556, %v425
    %v559 = vmax.f32 %v557, %v428
    %v560 = vmax.f32 %v558, %v431
    %v561 = vmax.f32 %v559, %v434
    %v562 = vmax.f32 %v560, %v437
    %v563 = vmax.f32 %v561, %v440
    %v564 = vmax.f32 %v562, %v443
    %v565 = vmax.f32 %v563, %v446
    %v566 = vmax.f32 %v564, %v449
    %v567 = vmax.f32 %v565, %v452
    %v568 = vmax.f32 %v566, %v455
    %v569 = vmax.f32 %v567, %v458
    %v570 = vmax.f32 %v568, %v461
    %v571 = vmax.f32 %v569, %v464
    %v572 = vmax.f32 %v570, %v467
    %v573 = vmax.f32 %v571, %v470
    %v574 = vmax.f32 %v572, %v473
    %vm575 = vcmask 1043456
    %v576 = vsel %vm575, %v477, -inf
    %v577 = vmax.f32 %v573, %v576
    %v578 = vmax.f32 %v577, %v574
    %v579 = vrot.slane %v578, 4
    %v580 = vmax.f32 %v578, %v579
    %v581 = vrot.slane %v580, 2
    %v582 = vmax.f32 %v580, %v581
    %v583 = vrot.slane %v582, 1
    %v584 = vmax.f32 %v582, %v583
    %v585 = vmax.f32 %v480, %v486
    %v586 = vmax.f32 %v483, %v489
    %v587 = vmax.f32 %v585, %v492
    %v588 = vmax.f32 %v586, %v495
    %v589 = vmax.f32 %v587, %v498
    %v590 = vmax.f32 %v588, %v501
    %v591 = vmax.f32 %v589, %v504
    %v592 = vmax.f32 %v590, %v507
    %v593 = vmax.f32 %v591, %v510
    %v594 = vmax.f32 %v592, %v513
    %v595 = vmax.f32 %v593, %v516
    %v596 = vmax.f32 %v594, %v519
    %v597 = vmax.f32 %v595, %v522
    %v598 = vmax.f32 %v596, %v525
    %v599 = vmax.f32 %v597, %v528
    %v600 = vmax.f32 %v598, %v531
    %v601 = vmax.f32 %v599, %v534
    %v602 = vmax.f32 %v600, %v537
    %v603 = vmax.f32 %v601, %v540
    %v604 = vmax.f32 %v602, %v543
    %v605 = vmax.f32 %v603, %v546
    %v606 = vmax.f32 %v604, %v549
    %v607 = vsel %vm575, %v552, -inf
    %v608 = vmax.f32 %v605, %v607
    %v609 = vmax.f32 %v608, %v606
    %v610 = vrot.slane %v609, 4
    %v611 = vmax.f32 %v609, %v610
    %v612 = vrot.slane %v611, 2
    %v613 = vmax.f32 %v611, %v612
    %v614 = vrot.slane %v613, 1
    %v615 = vmax.f32 %v613, %v614
    %v616 = vsub.f32 %v404, %v584
    %v617 = vsub.f32 %v407, %v584
    %v618 = vsub.f32 %v410, %v584
    %v619 = vsub.f32 %v413, %v584
    %v620 = vsub.f32 %v416, %v584
    %v621 = vsub.f32 %v419, %v584
    %v622 = vsub.f32 %v422, %v584
    %v623 = vsub.f32 %v425, %v584
    %v624 = vsub.f32 %v428, %v584
    %v625 = vsub.f32 %v431, %v584
    %v626 = vsub.f32 %v434, %v584
    %v627 = vsub.f32 %v437, %v584
    %v628 = vsub.f32 %v440, %v584
    %v629 = vsub.f32 %v443, %v584
    %v630 = vsub.f32 %v446, %v584
    %v631 = vsub.f32 %v449, %v584
    %v632 = vsub.f32 %v452, %v584
    %v633 = vsub.f32 %v455, %v584
    %v634 = vsub.f32 %v458, %v584
    %v635 = vsub.f32 %v461, %v584
    %v636 = vsub.f32 %v464, %v584
    %v637 = vsub.f32 %v467, %v584
    %v638 = vsub.f32 %v470, %v584
    %v639 = vsub.f32 %v473, %v584
    %v640 = vsub.f32 %v477, %v584
    %v641 = vsub.f32 %v480, %v615
    %v642 = vsub.f32 %v483, %v615
    %v643 = vsub.f32 %v486, %v615
    %v644 = vsub.f32 %v489, %v615
    %v645 = vsub.f32 %v492, %v615
    %v646 = vsub.f32 %v495, %v615
    %v647 = vsub.f32 %v498, %v615
    %v648 = vsub.f32 %v501, %v615
    %v649 = vsub.f32 %v504, %v615
    %v650 = vsub.f32 %v507, %v615
    %v651 = vsub.f32 %v510, %v615
    %v652 = vsub.f32 %v513, %v615
    %v653 = vsub.f32 %v516, %v615
    %v654 = vsub.f32 %v519, %v615
    %v655 = vsub.f32 %v522, %v615
    %v656 = vsub.f32 %v525, %v615
    %v657 = vsub.f32 %v528, %v615
    %v658 = vsub.f32 %v531, %v615
    %v659 = vsub.f32 %v534, %v615
    %v660 = vsub.f32 %v537, %v615
    %v661 = vsub.f32 %v540, %v615
    %v662 = vsub.f32 %v543, %v615
    %v663 = vsub.f32 %v546, %v615
    %v664 = vsub.f32 %v549, %v615
    %v665 = vsub.f32 %v552, %v615
    %v666 = vmul.f32 %v616, 1.442695
    %v667 = vpow.pop %v666
    %v668 = vmul.f32 %v617, 1.442695
    %v669 = vpow.pop %v668
    %v670 = vmul.f32 %v618, 1.442695
    %v671 = vpow.pop %v670
    %v672 = vmul.f32 %v619, 1.442695
    %v673 = vpow.pop %v672
    %v674 = vmul.f32 %v620, 1.442695
    %v675 = vpow.pop %v674
    %v676 = vmul.f32 %v621, 1.442695
    %v677 = vpow.pop %v676
    %v678 = vmul.f32 %v622, 1.442695
    %v679 = vpow.pop %v678
    %v680 = vmul.f32 %v623, 1.442695
    %v681 = vpow.pop %v680
    %v682 = vmul.f32 %v624, 1.442695
    %v683 = vpow.pop %v682
    %v684 = vmul.f32 %v625, 1.442695
    %v685 = vpow.pop %v684
    %v686 = vmul.f32 %v626, 1.442695
    %v687 = vpow.pop %v686
    %v688 = vmul.f32 %v627, 1.442695
    %v689 = vpow.pop %v688
    %v690 = vmul.f32 %v628, 1.442695
    %v691 = vpow.pop %v690
    %v692 = vmul.f32 %v629, 1.442695
    %v693 = vpow.pop %v692
    %v694 = vmul.f32 %v630, 1.442695
    %v695 = vpow.pop %v694
    %v696 = vmul.f32 %v631, 1.442695
    %v697 = vpow.pop %v696
    %v698 = vmul.f32 %v632, 1.442695
    %v699 = vpow.pop %v698
    %v700 = vmul.f32 %v633, 1.442695
    %v701 = vpow.pop %v700
    %v702 = vmul.f32 %v634, 1.442695
    %v703 = vpow.pop %v702
    %v704 = vmul.f32 %v635, 1.442695
    %v705 = vpow.pop %v704
    %v706 = vmul.f32 %v636, 1.442695
    %v707 = vpow.pop %v706
    %v708 = vmul.f32 %v637, 1.442695
    %v709 = vpow.pop %v708
    %v710 = vmul.f32 %v638, 1.442695
    %v711 = vpow.pop %v710
    %v712 = vmul.f32 %v639, 1.442695
    %v713 = vpow.pop %v712
    %v714 = vmul.f32 %v640, 1.442695
    %v715 = vpow.pop %v714
    %v716 = vmul.f32 %v641, 1.442695
    %v717 = vpow.pop %v716
    %v718 = vmul.f32 %v642, 1.442695
    %v719 = vpow.pop %v718
    %v720 = vmul.f32 %v643, 1.442695
    %v721 = vpow.pop %v720
    %v722 = vmul.f32 %v644, 1.442695
    %v723 = vpow.pop %v722
    %v724 = vmul.f32 %v645, 1.442695
    %v725 = vpow.pop %v724
    %v726 = vmul.f32 %v646, 1.442695
    %v727 = vpow.pop %v726
    %v728 = vmul.f32 %v647, 1.442695
    %v729 = vpow.pop %v728
    %v730 = vmul.f32 %v648, 1.442695
    %v731 = vpow.pop %v730
    %v732 = vmul.f32 %v649, 1.442695
    %v733 = vpow.pop %v732
    %v734 = vmul.f32 %v650, 1.442695
    %v735 = vpow.pop %v734
    %v736 = vmul.f32 %v651, 1.442695
    %v737 = vpow.pop %v736
    %v738 = vmul.f32 %v652, 1.442695
    %v739 = vpow.pop %v738
    %v740 = vmul.f32 %v653, 1.442695
    %v741 = vpow.pop %v740
    %v742 = vmul.f32 %v654, 1.442695
    %v743 = vpow.pop %v742
    %v744 = vmul.f32 %v655, 1.442695
    %v745 = vpow.pop %v744
    %v746 = vmul.f32 %v656, 1.442695
    %v747 = vpow.pop %v746
    %v748 = vmul.f32 %v657, 1.442695
    %v749 = vpow.pop %v748
    %v750 = vmul.f32 %v658, 1.442695
    %v751 = vpow.pop %v750
    %v752 = vmul.f32 %v659, 1.442695
    %v753 = vpow.pop %v752
    %v754 = vmul.f32 %v660, 1.442695
    %v755 = vpow.pop %v754
    %v756 = vmul.f32 %v661, 1.442695
    %v757 = vpow.pop %v756
    %v758 = vmul.f32 %v662, 1.442695
    %v759 = vpow.pop %v758
    %v760 = vmul.f32 %v663, 1.442695
    %v761 = vpow.pop %v760
    %v762 = vmul.f32 %v664, 1.442695
    %v763 = vpow.pop %v762
    %v764 = vmul.f32 %v665, 1.442695
    %v765 = vpow.pop %v764
    %v766 = vadd.f32 %v667, %v669
    %v767 = vadd.f32 %v766, %v671
    %v768 = vadd.f32 %v767, %v673
    %v769 = vadd.f32 %v768, %v675
    %v770 = vadd.f32 %v769, %v677
    %v771 = vadd.f32 %v770, %v679
    %v772 = vadd.f32 %v771, %v681
    %v773 = vadd.f32 %v772, %v683
    %v774 = vadd.f32 %v773, %v685
    %v775 = vadd.f32 %v774, %v687
    %v776 = vadd.f32 %v775, %v689
    %v777 = vadd.f32 %v776, %v691
    %v778 = vadd.f32 %v777, %v693
    %v779 = vadd.f32 %v778, %v695
    %v780 = vadd.f32 %v779, %v697
    %v781 = vadd.f32 %v780, %v699
    %v782 = vadd.f32 %v781, %v701
    %v783 = vadd.f32 %v782, %v703
    %v784 = vadd.f32 %v783, %v705
    %v785 = vadd.f32 %v784, %v707
    %v786 = vadd.f32 %v785, %v709
    %v787 = vadd.f32 %v786, %v711
    %v788 = vadd.f32 %v787, %v713
    %v789 = vsel %vm575, %v715, 0.0
    %v790 = vadd.f32 %v788, %v789
    %v791 = vrot.slane %v790, 4
    %v792 = vadd.f32 %v790, %v791
    %v793 = vrot.slane %v792, 2
    %v794 = vadd.f32 %v792, %v793
    %v795 = vrot.slane %v794, 1
    %v796 = vadd.f32 %v794, %v795
    %v797 = vadd.f32 %v717, %v719
    %v798 = vadd.f32 %v797, %v721
    %v799 = vadd.f32 %v798, %v723
    %v800 = vadd.f32 %v799, %v725
    %v801 = vadd.f32 %v800, %v727
    %v802 = vadd.f32 %v801, %v729
    %v803 = vadd.f32 %v802, %v731
    %v804 = vadd.f32 %v803, %v733
    %v805 = vadd.f32 %v804, %v735
    %v806 = vadd.f32 %v805, %v737
    %v807 = vadd.f32 %v806, %v739
    %v808 = vadd.f32 %v807, %v741
    %v809 = vadd.f32 %v808, %v743
    %v810 = vadd.f32 %v809, %v745
    %v811 = vadd.f32 %v810, %v747
    %v812 = vadd.f32 %v811, %v749
    %v813 = vadd.f32 %v812, %v751
    %v814 = vadd.f32 %v813, %v753
    %v815 = vadd.f32 %v814, %v755
    %v816 = vadd.f32 %v815, %v757
    %v817 = vadd.f32 %v816, %v759
    %v818 = vadd.f32 %v817, %v761
    %v819 = vadd.f32 %v818, %v763
    %v820 = vsel %vm575, %v765, 0.0
    %v821 = vadd.f32 %v819, %v820
    %v822 = vrot.slane %v821, 4
    %v823 = vadd.f32 %v821, %v822
    %v824 = vrot.slane %v823, 2
    %v825 = vadd.f32 %v823, %v824
    %v826 = vrot.slane %v825, 1
    %v827 = vadd.f32 %v825, %v826
    %v828 = vmul.f32 %v133, %v667
    %v829 = vmul.f32 %v134, %v669
    %v830 = vmul.f32 %v135, %v671
    %v831 = vmul.f32 %v136, %v673
    %v832 = vmul.f32 %v137, %v675
    %v833 = vmul.f32 %v138, %v677
    %v834 = vmul.f32 %v139, %v679
    %v835 = vmul.f32 %v140, %v681
    %v836 = vmul.f32 %v141, %v683
    %v837 = vmul.f32 %v142, %v685
    %v838 = vmul.f32 %v143, %v687
    %v839 = vmul.f32 %v144, %v689
    %v840 = vmul.f32 %v145, %v691
    %v841 = vmul.f32 %v146, %v693
    %v842 = vmul.f32 %v147, %v695
    %v843 = vmul.f32 %v148, %v697
    %v844 = vmul.f32 %v165, %v699
    %v845 = vmul.f32 %v166, %v701
    %v846 = vmul.f32 %v167, %v703
    %v847 = vmul.f32 %v168, %v705
    %v848 = vmul.f32 %v169, %v707
    %v849 = vmul.f32 %v170, %v709
    %v850 = vmul.f32 %v171, %v711
    %v851 = vmul.f32 %v172, %v713
    %v852 = vmul.f32 %v173, %v715
    %v853 = vmul.f32 %v197, %v717
    %v854 = vmul.f32 %v198, %v719
    %v855 = vmul.f32 %v199, %v721
    %v856 = vmul.f32 %v200, %v723
    %v857 = vmul.f32 %v201, %v725
    %v858 = vmul.f32 %v202, %v727
    %v859 = vmul.f32 %v203, %v729
    %v860 = vmul.f32 %v204, %v731
    %v861 = vmul.f32 %v205, %v733
    %v862 = vmul.f32 %v206, %v735
    %v863 = vmul.f32 %v207, %v737
    %v864 = vmul.f32 %v208, %v739
    %v865 = vmul.f32 %v209, %v741
    %v866 = vmul.f32 %v210, %v743
    %v867 = vmul.f32 %v211, %v745
    %v868 = vmul.f32 %v212, %v747
    %v869 = vmul.f32 %v229, %v749
    %v870 = vmul.f32 %v230, %v751
    %v871 = vmul.f32 %v231, %v753
    %v872 = vmul.f32 %v232, %v755
    %v873 = vmul.f32 %v233, %v757
    %v874 = vmul.f32 %v234, %v759
    %v875 = vmul.f32 %v235, %v761
    %v876 = vmul.f32 %v236, %v763
    %v877 = vmul.f32 %v237, %v765
    %v878 = vsel %vm255, %v828, 0.0
    %v879 = vsel %vm255, %v829, 0.0
    %v880 = vadd.f32 %v878, %v879
    %v881 = vsel %vm255, %v830, 0.0
    %v882 = vadd.f32 %v880, %v881
    %v883 = vsel %vm255, %v831, 0.0
    %v884 = vadd.f32 %v882, %v883
    %v885 = vsel %vm255, %v832, 0.0
    %v886 = vadd.f32 %v884, %v885
    %v887 = vsel %vm255, %v833, 0.0
    %v888 = vadd.f32 %v886, %v887
    %v889 = vsel %vm255, %v834, 0.0
    %v890 = vadd.f32 %v888, %v889
    %v891 = vsel %vm255, %v835, 0.0
    %v892 = vadd.f32 %v890, %v891
    %v893 = vsel %vm255, %v836, 0.0
    %v894 = vadd.f32 %v892, %v893
    %v895 = vsel %vm255, %v837, 0.0
    %v896 = vadd.f32 %v894, %v895
    %v897 = vsel %vm255, %v838, 0.0
    %v898 = vadd.f32 %v896, %v897
    %v899 = vsel %vm255, %v839, 0.0
    %v900 = vadd.f32 %v898, %v899
    %v901 = vsel %vm255, %v840, 0.0
    %v902 = vadd.f32 %v900, %v901
    %v903 = vsel %vm255, %v841, 0.0
    %v904 = vadd.f32 %v902, %v903
    %v905 = vsel %vm255, %v842, 0.0
    %v906 = vadd.f32 %v904, %v905
    %v907 = vsel %vm255, %v843, 0.0
    %v908 = vadd.f32 %v906, %v907
    %v909 = vsel %vm255, %v844, 0.0
    %v910 = vadd.f32 %v908, %v909
    %v911 = vsel %vm255, %v845, 0.0
    %v912 = vadd.f32 %v910, %v911
    %v913 = vsel %vm255, %v846, 0.0
    %v914 = vadd.f32 %v912, %v913
    %v915 = vsel %vm255, %v847, 0.0
    %v916 = vadd.f32 %v914, %v915
    %v917 = vsel %vm255, %v848, 0.0
    %v918 = vadd.f32 %v916, %v917
    %v919 = vsel %vm255, %v849, 0.0
    %v920 = vadd.f32 %v918, %v919
    %v921 = vsel %vm255, %v850, 0.0
    %v922 = vadd.f32 %v920, %v921
    %v923 = vsel %vm255, %v851, 0.0
    %v924 = vadd.f32 %v922, %v923
    %v925 = vsel %vm474, %v852, 0.0
    %v926 = vadd.f32 %v924, %v925
    %v927 = vrot.slane %v926, 4
    %v928 = vadd.f32 %v926, %v927
    %v929 = vrot.slane %v928, 2
    %v930 = vadd.f32 %v928, %v929
    %v931 = vrot.slane %v930, 1
    %v932 = vadd.f32 %v930, %v931
    %v933 = vsel %vm255, %v853, 0.0
    %v934 = vsel %vm255, %v854, 0.0
    %v935 = vadd.f32 %v933, %v934
    %v936 = vsel %vm255, %v855, 0.0
    %v937 = vadd.f32 %v935, %v936
    %v938 = vsel %vm255, %v856, 0.0
    %v939 = vadd.f32 %v937, %v938
    %v940 = vsel %vm255, %v857, 0.0
    %v941 = vadd.f32 %v939, %v940
    %v942 = vsel %vm255, %v858, 0.0
    %v943 = vadd.f32 %v941, %v942
    %v944 = vsel %vm255, %v859, 0.0
    %v945 = vadd.f32 %v943, %v944
    %v946 = vsel %vm255, %v860, 0.0
    %v947 = vadd.f32 %v945, %v946
    %v948 = vsel %vm255, %v861, 0.0
    %v949 = vadd.f32 %v947, %v948
    %v950 = vsel %vm255, %v862, 0.0
    %v951 = vadd.f32 %v949, %v950
    %v952 = vsel %vm255, %v863, 0.0
    %v953 = vadd.f32 %v951, %v952
    %v954 = vsel %vm255, %v864, 0.0
    %v955 = vadd.f32 %v953, %v954
    %v956 = vsel %vm255, %v865, 0.0
    %v957 = vadd.f32 %v955, %v956
    %v958 = vsel %vm255, %v866, 0.0
    %v959 = vadd.f32 %v957, %v958
    %v960 = vsel %vm255, %v867, 0.0
    %v961 = vadd.f32 %v959, %v960
    %v962 = vsel %vm255, %v868, 0.0
    %v963 = vadd.f32 %v961, %v962
    %v964 = vsel %vm255, %v869, 0.0
    %v965 = vadd.f32 %v963, %v964
    %v966 = vsel %vm255, %v870, 0.0
    %v967 = vadd.f32 %v965, %v966
    %v968 = vsel %vm255, %v871, 0.0
    %v969 = vadd.f32 %v967, %v968
    %v970 = vsel %vm255, %v872, 0.0
    %v971 = vadd.f32 %v969, %v970
    %v972 = vsel %vm255, %v873, 0.0
    %v973 = vadd.f32 %v971, %v972
    %v974 = vsel %vm255, %v874, 0.0
    %v975 = vadd.f32 %v973, %v974
    %v976 = vsel %vm255, %v875, 0.0
    %v977 = vadd.f32 %v975, %v976
    %v978 = vsel %vm255, %v876, 0.0
    %v979 = vadd.f32 %v977, %v978
    %v980 = vsel %vm474, %v877, 0.0
    %v981 = vadd.f32 %v979, %v980
    %v982 = vrot.slane %v981, 4
    %v983 = vadd.f32 %v981, %v982
    %v984 = vrot.slane %v983, 2
    %v985 = vadd.f32 %v983, %v984
    %v986 = vrot.slane %v985, 1
    %v987 = vadd.f32 %v985, %v986
    %v988 = vrcp.pop %v796
    %v989 = vrcp.pop %v827
    %v990 = vmul.f32 %v932, %v988
    %v991 = vmul.f32 %v987, %v989
    %992 = vst.msk [vmem:[#allocation2] sm:$0x1] %vm341, %v990
    %993 = vst.msk [vmem:[#allocation2 + $0x1] sm:$0x1] %vm341, %v991
    %v994 = vld [vmem:[#allocation2] sm:$0x1]
    %v995 = vld [vmem:[#allocation2 + $0x1] sm:$0x1]
    %998 = vst [vmem:[#allocation1] ss:$9 sm:$0xff] %v994
    %s999 = scalar_lea.vmem [#allocation1], 1
    %1000 = vst [vmem:[%s999] ss:$9 sm:$0xff] %v995
    %v1001 = vld [vmem:[#allocation1] sm:$0xff]
    %vm1003 = vcmask 254976
    %1004 = vst.msk [vmem:[#allocation12] sm:$0x3] %vm1003, %v1001
    // Predicated region
    $region50: #{tpu_custom_call.1} parent=1 // pred_check
      _
    $region51: #{tpu_custom_call.1} parent=1 // pred_check_branch
      %1006 = sbr.rel (0) target = $region53
    $region52: #{tpu_custom_call.1} parent=1 // pred_region
      %1008 = vsyncadd [#allocation5], 0
      %s1010 = sshll.u32 [#allocation12], 4
      %s1011 = int_to_ptr.vmem [resolvable:$true] %s1010
      %s1012 = sshll.u32 %s7, 4
      %s1013 = int_to_ptr.hbm [resolvable:$true] %s1012
      %1015 = dma.vmem_to_hbm [thread:$0]  %s1011, 32, %s1013, [#allocation5]
    $region53: #{tpu_custom_call.1} parent=1 // pred_fallthru
      _
    // Predicated region
    $region54: #{tpu_custom_call.1} parent=1 // pred_check
      _
    $region55: #{tpu_custom_call.1} parent=1 // pred_check_branch
      %1017 = sbr.rel (0) target = $region57
    $region56: #{tpu_custom_call.1} parent=1 // pred_region
      %1019 = dma.done [#allocation5], 32
    $region57: #{tpu_custom_call.1} parent=1 // pred_fallthru
      _
    %1020 = vsyncpa [#allocation4], 1
    %1021 = vsyncpa [#allocation7], 1
    %1022 = vsyncpa [#allocation10], 1
    %1023 = vsyncpa [#allocation5], 1

</llo_original>
